<compile_context>
chip_gen: v5e
topology: v5e:2x2
jax: 0.10.0
libtpu: 0.0.40
codegen_flags: <defaults>
</compile_context>

<pallas_src>
import jax
import jax.numpy as jnp
from jax.experimental import pallas as pl
from jax.experimental.pallas import tpu as pltpu


def _round_up(n: int, m: int) -> int:
    return ((n + m - 1) // m) * m


def mlp_kernel(x_ref, w1_ref, b1_ref, w2_ref, b2_ref, w3_ref, b3_ref, o_ref):
    """One (TB, 784) batch tile per grid step; all three layers fused in VMEM."""
    compute_dtype = w1_ref.dtype            # bf16 by default, f32 if use_bf16=False
    x = x_ref[...].astype(compute_dtype)    # in-VMEM cast; no extra HBM pass

    h1 = jnp.dot(x, w1_ref[...], preferred_element_type=jnp.float32)
    h1 = jnp.maximum(h1 + b1_ref[...], 0.0)              # (TB, 128), f32 bias/acc
    h1 = h1.astype(compute_dtype)

    h2 = jnp.dot(h1, w2_ref[...], preferred_element_type=jnp.float32)
    h2 = jnp.maximum(h2 + b2_ref[...], 0.0)              # (TB, 64)
    h2 = h2.astype(compute_dtype)

    out = jnp.dot(h2, w3_ref[...], preferred_element_type=jnp.float32)
    o_ref[...] = (out + b3_ref[...]).astype(o_ref.dtype)  # (TB, 10)


def mnist_classifier_forward(x, params, *, block_b=4096, use_bf16=True):
    """x: (B, 1, 28, 28) or (B, 784), f32 or bf16. Returns logits (B, 10) f32.

    block_b: max rows per batch tile (rounded to a multiple of 8).  4096 keeps
    the ~0.35 us per-grid-step overhead small while the bf16 double-buffered
    x tile (2 x TB x 896 padded lanes) stays inside v7x's 64 MiB VMEM; raise
    to 8192 on v6e/v5e (128 MiB VMEM).
    use_bf16: bf16 weights + bf16 x tile (single-pass MXU matmuls); f32
    accumulation and f32 biases are kept.  Pass x already as bf16 to also
    halve the dominant HBM read (the wrapper never adds a standalone cast
    pass over x).
    """
    w1, b1, w2, b2, w3, b3 = params
    x2d = x.reshape(-1, 28 * 28)            # like torch .view(-1, 784); no dtype copy
    B = x2d.shape[0]

    if use_bf16:
        # Tiny (~0.44 MiB total); biases stay f32 (added to the f32 accumulator).
        w1, w2, w3 = (w.astype(jnp.bfloat16) for w in (w1, w2, w3))

    # Pad only to a multiple of 8 rows (sublane alignment).  Unlike the old
    # pad-to-TB this almost never triggers, so no repeated full-HBM copy of x.
    Bp = _round_up(B, 8)
    if Bp != B:
        x2d = jnp.pad(x2d, ((0, Bp - B), (0, 0)))

    TB = min(_round_up(block_b, 8), Bp)
    grid = (pl.cdiv(Bp, TB),)               # ragged last block -> Pallas masks OOB rows

    # VMEM budget per grid step (includes 784 -> 896 lane padding of K):
    #   x tile      : 2 (double buffer) * TB * 896 * itemsize(x)
    #   out tile    : 2 * TB * 128 (lane-padded) * 4
    #   h1/h2 temps : ~TB * 256 * (4 + compute itemsize)
    x_itemsize = jnp.dtype(x2d.dtype).itemsize
    c_itemsize = 2 if use_bf16 else 4
    per_row = (2 * 896 * x_itemsize) + (2 * 128 * 4) + 256 * (4 + c_itemsize)
    vmem_limit = min(max(32 << 20, int(TB * per_row * 1.25) + (4 << 20)), 100 << 20)

    x_spec = pl.BlockSpec((TB, 28 * 28), lambda i: (i, 0))
    out_spec = pl.BlockSpec((TB, 10), lambda i: (i, 0))
    # Constant index_maps: weights/biases DMA'd once, kept VMEM-resident.
    pinned = lambda shape: pl.BlockSpec(shape, lambda i: (0, 0))

    logits = pl.pallas_call(
        mlp_kernel,
        out_shape=jax.ShapeDtypeStruct((Bp, 10), jnp.float32),
        grid=grid,
        in_specs=[
            x_spec,
            pinned(w1.shape), pinned(b1.shape),
            pinned(w2.shape), pinned(b2.shape),
            pinned(w3.shape), pinned(b3.shape),
        ],
        out_specs=out_spec,
        compiler_params=pltpu.CompilerParams(
            # Batch axis is embarrassingly parallel.  (v7x tuning: try
            # pltpu.CORE_PARALLEL if "parallel" does not split across the 2 TCs.)
            dimension_semantics=("parallel",),
            vmem_limit_bytes=vmem_limit,
        ),
    )(x2d, w1, b1, w2, b2, w3, b3)

    return logits[:B]


def init_params(key):
    """Deterministic init mimicking nn.Linear's uniform(+-1/sqrt(fan_in)) scale."""
    ks = jax.random.split(key, 6)

    def linear(kw, kb, fan_in, fan_out):
        bound = 1.0 / jnp.sqrt(fan_in)
        w = jax.random.uniform(kw, (fan_in, fan_out), jnp.float32, -bound, bound)
        b = jax.random.uniform(kb, (1, fan_out), jnp.float32, -bound, bound)
        return w, b

    w1, b1 = linear(ks[0], ks[1], 28 * 28, 128)
    w2, b2 = linear(ks[2], ks[3], 128, 64)
    w3, b3 = linear(ks[4], ks[5], 64, 10)
    return (w1, b1, w2, b2, w3, b3)


def _reference(x, params, *, compute_dtype=jnp.float32):
    """Pure-JAX reference mirroring the kernel's (optional) bf16 rounding."""
    w1, b1, w2, b2, w3, b3 = params
    hp = jax.lax.Precision.HIGHEST

    def rd(a):  # round-trip through compute_dtype, accumulate in f32
        return a.astype(compute_dtype).astype(jnp.float32)

    x2d = rd(x.reshape(-1, 28 * 28))
    h = rd(jnp.maximum(jnp.dot(x2d, rd(w1), precision=hp) + b1, 0.0))
    h = rd(jnp.maximum(jnp.dot(h, rd(w2), precision=hp) + b2, 0.0))
    return jnp.dot(h, rd(w3), precision=hp) + b3


if __name__ == "__main__":
    key = jax.random.PRNGKey(0)
    k1, k2, k3, kp = jax.random.split(key, 4)
    params = init_params(kp)

    # 1) Exact f32 path (matches PyTorch nn.Linear f32 semantics), single grid step.
    x1 = jax.random.normal(k1, (8, 1, 28, 28), dtype=jnp.float32)
    out1 = jax.block_until_ready(mnist_classifier_forward(x1, params, use_bf16=False))
    ref1 = _reference(x1, params)
    assert out1.shape == (8, 10)
    assert jnp.allclose(out1, ref1, atol=2e-4, rtol=2e-4), float(
        jnp.max(jnp.abs(out1 - ref1)))

    # 2) Default bf16 path, multi-step grid with a ragged last block
    #    (B=24, TB=16 -> grid=(2,), second block half out-of-bounds, masked).
    x2 = jax.random.normal(k2, (24, 1, 28, 28), dtype=jnp.float32)
    out2 = jax.block_until_ready(mnist_classifier_forward(x2, params, block_b=16))
    ref2 = _reference(x2, params, compute_dtype=jnp.bfloat16)
    assert out2.shape == (24, 10)
    assert jnp.allclose(out2, ref2, atol=2e-2, rtol=2e-2), float(
        jnp.max(jnp.abs(out2 - ref2)))

    # 3) bf16 input (full HBM-bandwidth win), B not a multiple of 8 (small-pad path).
    x3 = jax.random.normal(k3, (10, 1, 28, 28), dtype=jnp.float32).astype(jnp.bfloat16)
    out3 = jax.block_until_ready(mnist_classifier_forward(x3, params))
    ref3 = _reference(x3, params, compute_dtype=jnp.bfloat16)
    assert out3.shape == (10, 10)
    assert jnp.allclose(out3, ref3, atol=2e-2, rtol=2e-2), float(
        jnp.max(jnp.abs(out3 - ref3)))

    print("KERNEL_OK")
</pallas_src>

<mosaic_0001>
module attributes {stable_mosaic.version = 11 : i64} {
  func.func @mlp_kernel(%arg0: i32, %arg1: memref<8x784xf32, #tpu.memory_space<vmem>>, %arg2: memref<784x128xf32, #tpu.memory_space<vmem>>, %arg3: memref<1x128xf32, #tpu.memory_space<vmem>>, %arg4: memref<128x64xf32, #tpu.memory_space<vmem>>, %arg5: memref<1x64xf32, #tpu.memory_space<vmem>>, %arg6: memref<64x10xf32, #tpu.memory_space<vmem>>, %arg7: memref<1x10xf32, #tpu.memory_space<vmem>>, %arg8: memref<8x10xf32, #tpu.memory_space<vmem>>) attributes {dimension_semantics = [#tpu.dimension_semantics<parallel>], iteration_bounds = array<i64: 1>, scalar_prefetch = 0 : i64, scratch_operands = 0 : i64, tpu.core_type = #tpu.core_type<tc>, window_params = [{transform_indices = @transform_0, window_bounds = array<i64: 8, 784>}, {pipeline_mode = #tpu.pipeline_mode<synchronous>, transform_indices = @transform_1, window_bounds = array<i64: 784, 128>}, {pipeline_mode = #tpu.pipeline_mode<synchronous>, transform_indices = @transform_2, window_bounds = array<i64: 1, 128>}, {pipeline_mode = #tpu.pipeline_mode<synchronous>, transform_indices = @transform_3, window_bounds = array<i64: 128, 64>}, {pipeline_mode = #tpu.pipeline_mode<synchronous>, transform_indices = @transform_4, window_bounds = array<i64: 1, 64>}, {pipeline_mode = #tpu.pipeline_mode<synchronous>, transform_indices = @transform_5, window_bounds = array<i64: 64, 10>}, {pipeline_mode = #tpu.pipeline_mode<synchronous>, transform_indices = @transform_6, window_bounds = array<i64: 1, 10>}, {transform_indices = @transform_7, window_bounds = array<i64: 8, 10>}]} {
    %c0 = arith.constant 0 : index
    %c0_0 = arith.constant 0 : index
    %0 = vector.load %arg1[%c0, %c0_0] : memref<8x784xf32, #tpu.memory_space<vmem>>, vector<8x784xf32>
    %c0_1 = arith.constant 0 : index
    %c0_2 = arith.constant 0 : index
    %1 = vector.load %arg2[%c0_1, %c0_2] : memref<784x128xf32, #tpu.memory_space<vmem>>, vector<784x128xf32>
    %cst = arith.constant dense<0.000000e+00> : vector<8x128xf32>
    %2 = tpu.matmul %0, %1, %cst {dimension_numbers = #tpu.dot_dimension_numbers<[1], [0], [0], [1], [0, 0, 1, 1], [], []>} : vector<8x784xf32>, vector<784x128xf32>, vector<8x128xf32> -> vector<8x128xf32>
    %c0_3 = arith.constant 0 : index
    %c0_4 = arith.constant 0 : index
    %3 = vector.load %arg3[%c0_3, %c0_4] : memref<1x128xf32, #tpu.memory_space<vmem>>, vector<1x128xf32>
    %4 = vector.broadcast %3 : vector<1x128xf32> to vector<8x128xf32>
    %5 = arith.addf %2, %4 : vector<8x128xf32>
    %cst_5 = arith.constant 0.000000e+00 : f32
    %6 = vector.broadcast %cst_5 : f32 to vector<8x128xf32>
    %7 = arith.maximumf %5, %6 : vector<8x128xf32>
    %c0_6 = arith.constant 0 : index
    %c0_7 = arith.constant 0 : index
    %8 = vector.load %arg4[%c0_6, %c0_7] : memref<128x64xf32, #tpu.memory_space<vmem>>, vector<128x64xf32>
    %cst_8 = arith.constant dense<0.000000e+00> : vector<8x64xf32>
    %9 = tpu.matmul %7, %8, %cst_8 {dimension_numbers = #tpu.dot_dimension_numbers<[1], [0], [0], [1], [0, 0, 1, 1], [], []>} : vector<8x128xf32>, vector<128x64xf32>, vector<8x64xf32> -> vector<8x64xf32>
    %c0_9 = arith.constant 0 : index
    %c0_10 = arith.constant 0 : index
    %10 = vector.load %arg5[%c0_9, %c0_10] : memref<1x64xf32, #tpu.memory_space<vmem>>, vector<1x64xf32>
    %11 = vector.broadcast %10 : vector<1x64xf32> to vector<8x64xf32>
    %12 = arith.addf %9, %11 : vector<8x64xf32>
    %cst_11 = arith.constant 0.000000e+00 : f32
    %13 = vector.broadcast %cst_11 : f32 to vector<8x64xf32>
    %14 = arith.maximumf %12, %13 : vector<8x64xf32>
    %c0_12 = arith.constant 0 : index
    %c0_13 = arith.constant 0 : index
    %15 = vector.load %arg6[%c0_12, %c0_13] : memref<64x10xf32, #tpu.memory_space<vmem>>, vector<64x10xf32>
    %cst_14 = arith.constant dense<0.000000e+00> : vector<8x10xf32>
    %16 = tpu.matmul %14, %15, %cst_14 {dimension_numbers = #tpu.dot_dimension_numbers<[1], [0], [0], [1], [0, 0, 1, 1], [], []>} : vector<8x64xf32>, vector<64x10xf32>, vector<8x10xf32> -> vector<8x10xf32>
    %c0_15 = arith.constant 0 : index
    %c0_16 = arith.constant 0 : index
    %17 = vector.load %arg7[%c0_15, %c0_16] : memref<1x10xf32, #tpu.memory_space<vmem>>, vector<1x10xf32>
    %18 = vector.broadcast %17 : vector<1x10xf32> to vector<8x10xf32>
    %19 = arith.addf %16, %18 : vector<8x10xf32>
    %c0_17 = arith.constant 0 : index
    %c0_18 = arith.constant 0 : index
    %20 = vector.load %arg8[%c0_17, %c0_18] : memref<8x10xf32, #tpu.memory_space<vmem>>, vector<8x10xf32>
    tpu.vector_store %arg8[%c0_17, %c0_18], %19 {strides = array<i32>} : memref<8x10xf32, #tpu.memory_space<vmem>>, vector<8x10xf32>,
    return
  }
  func.func @transform_0(%arg0: i32) -> (i32, i32) {
    %c0_i32 = arith.constant 0 : i32
    %c0_i32_0 = arith.constant 0 : i32
    return %arg0, %c0_i32 : i32, i32
  }
  func.func @transform_1(%arg0: i32) -> (i32, i32) {
    %c0_i32 = arith.constant 0 : i32
    %c0_i32_0 = arith.constant 0 : i32
    %c0_i32_1 = arith.constant 0 : i32
    return %c0_i32, %c0_i32_0 : i32, i32
  }
  func.func @transform_2(%arg0: i32) -> (i32, i32) {
    %c0_i32 = arith.constant 0 : i32
    %c0_i32_0 = arith.constant 0 : i32
    %c0_i32_1 = arith.constant 0 : i32
    return %c0_i32, %c0_i32_0 : i32, i32
  }
  func.func @transform_3(%arg0: i32) -> (i32, i32) {
    %c0_i32 = arith.constant 0 : i32
    %c0_i32_0 = arith.constant 0 : i32
    %c0_i32_1 = arith.constant 0 : i32
    return %c0_i32, %c0_i32_0 : i32, i32
  }
  func.func @transform_4(%arg0: i32) -> (i32, i32) {
    %c0_i32 = arith.constant 0 : i32
    %c0_i32_0 = arith.constant 0 : i32
    %c0_i32_1 = arith.constant 0 : i32
    return %c0_i32, %c0_i32_0 : i32, i32
  }
  func.func @transform_5(%arg0: i32) -> (i32, i32) {
    %c0_i32 = arith.constant 0 : i32
    %c0_i32_0 = arith.constant 0 : i32
    %c0_i32_1 = arith.constant 0 : i32
    return %c0_i32, %c0_i32_0 : i32, i32
  }
  func.func @transform_6(%arg0: i32) -> (i32, i32) {
    %c0_i32 = arith.constant 0 : i32
    %c0_i32_0 = arith.constant 0 : i32
    %c0_i32_1 = arith.constant 0 : i32
    return %c0_i32, %c0_i32_0 : i32, i32
  }
  func.func @transform_7(%arg0: i32) -> (i32, i32) {
    %c0_i32 = arith.constant 0 : i32
    %c0_i32_0 = arith.constant 0 : i32
    return %arg0, %c0_i32 : i32, i32
  }
}

</mosaic_0001>

<llo_original>
// kernel: tpu_custom_call.1
$region0: #{tpu_custom_call.1}
  #allocation0 [shape = 'u32[]', space=smem, size = 0x4, offset = 0x4, fixed_abs, tag = 'smem constant byte address 0x4 - core index']
  #allocation1 [shape = 'u32[72,128]{1,0:T(1,128)}', space=vmem, size = 0x9000, scoped, tag = 'internal scratch']
  %s0 = inlined_call_operand.vmem [shape: f32[8,784], index: 0, kind: input, shape index: {}]
  %s1 = inlined_call_operand.hbm [shape: f32[784,128], index: 1, kind: input, shape index: {}]
  %s2 = inlined_call_operand.vmem [shape: f32[1,128], index: 2, kind: input, shape index: {}]
  %s3 = inlined_call_operand.vmem [shape: f32[128,64], index: 3, kind: input, shape index: {}]
  %s4 = inlined_call_operand.vmem [shape: f32[1,64], index: 4, kind: input, shape index: {}]
  %s5 = inlined_call_operand.vmem [shape: f32[64,10], index: 5, kind: input, shape index: {}]
  %s6 = inlined_call_operand.vmem [shape: f32[1,10], index: 6, kind: input, shape index: {}]
  %s7 = inlined_call_operand.hbm [shape: f32[8,10], index: 7, kind: output, shape index: {}]
  %s8 = sld [smem:[#allocation0]]
  $region42: #{tpu_custom_call.1} parent=0
    _
  %s10 = ssub.s32 1, %s8
  %s11 = scalar_select 0, %s10, %s8
  $region1: #{tpu_custom_call.1} parent=0
    #allocation2 [shape = 'u8[401408]{0}', space=vmem, size = 0x62000, scoped, tag = 'input window, operand 1, single buffered']
    #allocation3 [shape = 's32[1]{0}', space=sflag, size = 0x4, scoped, tag = 'scoped memory for tpu_custom_call.1']
    #allocation4 [shape = 's32[1]{0}', space=sflag, size = 0x4, scoped, tag = 'scoped memory for tpu_custom_call.1']
    #allocation5 [shape = 'u8[4096]{0}', space=vmem, size = 0x1000, scoped, tag = 'output window, operand 0, single buffered']
    %12 = vsyncpa [#allocation3], 0
    %13 = vsyncpa [#allocation4], 0
    // Predicated region
    $region2: #{tpu_custom_call.1} parent=1 // pred_check
      _
    $region3: #{tpu_custom_call.1} parent=1 // pred_check_branch
      %15 = sbr.rel (0) target = $region5
    $region4: #{tpu_custom_call.1} parent=1 // pred_region
      _
    $region5: #{tpu_custom_call.1} parent=1 // pred_fallthru
      _
    // Predicated region
    $region6: #{tpu_custom_call.1} parent=1 // pred_check
      _
    $region7: #{tpu_custom_call.1} parent=1 // pred_check_branch
      %17 = sbr.rel (0) target = $region9
    $region8: #{tpu_custom_call.1} parent=1 // pred_region
      %19 = vsyncadd [#allocation3], 0
      %s20 = sshll.u32 %s1, 4
      %s21 = int_to_ptr.hbm [resolvable:$true] %s20
      %s22 = sshll.u32 [#allocation2], 4
      %s23 = int_to_ptr.vmem [resolvable:$true] %s22
      %28 = dma.hbm_to_vmem [thread:$0]  %s21, 12544, %s23, [#allocation3], 128, 128, 8
    $region9: #{tpu_custom_call.1} parent=1 // pred_fallthru
      _
    // Predicated region
    $region10: #{tpu_custom_call.1} parent=1 // pred_check
      _
    $region11: #{tpu_custom_call.1} parent=1 // pred_check_branch
      %30 = sbr.rel (0) target = $region13
    $region12: #{tpu_custom_call.1} parent=1 // pred_region
      _
    $region13: #{tpu_custom_call.1} parent=1 // pred_fallthru
      _
    // Predicated region
    $region14: #{tpu_custom_call.1} parent=1 // pred_check
      _
    $region15: #{tpu_custom_call.1} parent=1 // pred_check_branch
      %32 = sbr.rel (0) target = $region17
    $region16: #{tpu_custom_call.1} parent=1 // pred_region
      _
    $region17: #{tpu_custom_call.1} parent=1 // pred_fallthru
      _
    // Predicated region
    $region18: #{tpu_custom_call.1} parent=1 // pred_check
      _
    $region19: #{tpu_custom_call.1} parent=1 // pred_check_branch
      %34 = sbr.rel (0) target = $region21
    $region20: #{tpu_custom_call.1} parent=1 // pred_region
      _
    $region21: #{tpu_custom_call.1} parent=1 // pred_fallthru
      _
    // Predicated region
    $region22: #{tpu_custom_call.1} parent=1 // pred_check
      _
    $region23: #{tpu_custom_call.1} parent=1 // pred_check_branch
      %36 = sbr.rel (0) target = $region25
    $region24: #{tpu_custom_call.1} parent=1 // pred_region
      _
    $region25: #{tpu_custom_call.1} parent=1 // pred_fallthru
      _
    // Predicated region
    $region26: #{tpu_custom_call.1} parent=1 // pred_check
      _
    $region27: #{tpu_custom_call.1} parent=1 // pred_check_branch
      %38 = sbr.rel (0) target = $region29
    $region28: #{tpu_custom_call.1} parent=1 // pred_region
      _
    $region29: #{tpu_custom_call.1} parent=1 // pred_fallthru
      _
    // Predicated region
    $region30: #{tpu_custom_call.1} parent=1 // pred_check
      _
    $region31: #{tpu_custom_call.1} parent=1 // pred_check_branch
      %40 = sbr.rel (0) target = $region33
    $region32: #{tpu_custom_call.1} parent=1 // pred_region
      %42 = dma.done [#allocation3], 12544
    $region33: #{tpu_custom_call.1} parent=1 // pred_fallthru
      _
    %v43 = vld [vmem:[%s0] sm:$0xff]
    %v44 = vld [vmem:[%s0 + $0x8] sm:$0xff]
    %v45 = vld [vmem:[%s0 + $0x10] sm:$0xff]
    %v46 = vld [vmem:[%s0 + $0x18] sm:$0xff]
    %v47 = vld [vmem:[%s0 + $0x20] sm:$0xff]
    %v48 = vld [vmem:[%s0 + $0x28] sm:$0xff]
    %v49 = vld [vmem:[%s0 + $0x30] sm:$0xff]
    %v50 = vld [vmem:[#allocation2] sm:$0xff]
    %v51 = vld [vmem:[#allocation2 + $0x8] sm:$0xff]
    %v52 = vld [vmem:[#allocation2 + $0x10] sm:$0xff]
    %v53 = vld [vmem:[#allocation2 + $0x18] sm:$0xff]
    %v54 = vld [vmem:[#allocation2 + $0x20] sm:$0xff]
    %v55 = vld [vmem:[#allocation2 + $0x28] sm:$0xff]
    %v56 = vld [vmem:[#allocation2 + $0x30] sm:$0xff]
    %v57 = vld [vmem:[#allocation2 + $0x38] sm:$0xff]
    %v58 = vld [vmem:[#allocation2 + $0x40] sm:$0xff]
    %v59 = vld [vmem:[#allocation2 + $0x48] sm:$0xff]
    %v60 = vld [vmem:[#allocation2 + $0x50] sm:$0xff]
    %v61 = vld [vmem:[#allocation2 + $0x58] sm:$0xff]
    %v62 = vld [vmem:[#allocation2 + $0x60] sm:$0xff]
    %v63 = vld [vmem:[#allocation2 + $0x68] sm:$0xff]
    %v64 = vld [vmem:[#allocation2 + $0x70] sm:$0xff]
    %v65 = vld [vmem:[#allocation2 + $0x78] sm:$0xff]
    %v66 = vld [vmem:[#allocation2 + $0x80] sm:$0xff]
    %v67 = vld [vmem:[#allocation2 + $0x88] sm:$0xff]
    %v68 = vld [vmem:[#allocation2 + $0x90] sm:$0xff]
    %v69 = vld [vmem:[#allocation2 + $0x98] sm:$0xff]
    %v70 = vld [vmem:[#allocation2 + $0xa0] sm:$0xff]
    %v71 = vld [vmem:[#allocation2 + $0xa8] sm:$0xff]
    %v72 = vld [vmem:[#allocation2 + $0xb0] sm:$0xff]
    %v73 = vld [vmem:[#allocation2 + $0xb8] sm:$0xff]
    %v74 = vld [vmem:[#allocation2 + $0xc0] sm:$0xff]
    %v75 = vld [vmem:[#allocation2 + $0xc8] sm:$0xff]
    %v76 = vld [vmem:[#allocation2 + $0xd0] sm:$0xff]
    %v77 = vld [vmem:[#allocation2 + $0xd8] sm:$0xff]
    %v78 = vld [vmem:[#allocation2 + $0xe0] sm:$0xff]
    %v79 = vld [vmem:[#allocation2 + $0xe8] sm:$0xff]
    %v80 = vld [vmem:[#allocation2 + $0xf0] sm:$0xff]
    %v81 = vld [vmem:[#allocation2 + $0xf8] sm:$0xff]
    %v82 = vld [vmem:[#allocation2 + $0x100] sm:$0xff]
    %v83 = vld [vmem:[#allocation2 + $0x108] sm:$0xff]
    %v84 = vld [vmem:[#allocation2 + $0x110] sm:$0xff]
    %v85 = vld [vmem:[#allocation2 + $0x118] sm:$0xff]
    %v86 = vld [vmem:[#allocation2 + $0x120] sm:$0xff]
    %v87 = vld [vmem:[#allocation2 + $0x128] sm:$0xff]
    %v88 = vld [vmem:[#allocation2 + $0x130] sm:$0xff]
    %v89 = vld [vmem:[#allocation2 + $0x138] sm:$0xff]
    %v90 = vld [vmem:[#allocation2 + $0x140] sm:$0xff]
    %v91 = vld [vmem:[#allocation2 + $0x148] sm:$0xff]
    %v92 = vld [vmem:[#allocation2 + $0x150] sm:$0xff]
    %v93 = vld [vmem:[#allocation2 + $0x158] sm:$0xff]
    %v94 = vld [vmem:[#allocation2 + $0x160] sm:$0xff]
    %v95 = vld [vmem:[#allocation2 + $0x168] sm:$0xff]
    %v96 = vld [vmem:[#allocation2 + $0x170] sm:$0xff]
    %v97 = vld [vmem:[#allocation2 + $0x178] sm:$0xff]
    %v98 = vld [vmem:[#allocation2 + $0x180] sm:$0xff]
    %v99 = vld [vmem:[#allocation2 + $0x188] sm:$0xff]
    %v100 = vld [vmem:[#allocation2 + $0x190] sm:$0xff]
    %v101 = vld [vmem:[#allocation2 + $0x198] sm:$0xff]
    %v102 = vld [vmem:[#allocation2 + $0x1a0] sm:$0xff]
    %v103 = vld [vmem:[#allocation2 + $0x1a8] sm:$0xff]
    %v104 = vld [vmem:[#allocation2 + $0x1b0] sm:$0xff]
    %v105 = vld [vmem:[#allocation2 + $0x1b8] sm:$0xff]
    %v106 = vld [vmem:[#allocation2 + $0x1c0] sm:$0xff]
    %v107 = vld [vmem:[#allocation2 + $0x1c8] sm:$0xff]
    %v108 = vld [vmem:[#allocation2 + $0x1d0] sm:$0xff]
    %v109 = vld [vmem:[#allocation2 + $0x1d8] sm:$0xff]
    %v110 = vld [vmem:[#allocation2 + $0x1e0] sm:$0xff]
    %v111 = vld [vmem:[#allocation2 + $0x1e8] sm:$0xff]
    %v112 = vld [vmem:[#allocation2 + $0x1f0] sm:$0xff]
    %v113 = vld [vmem:[#allocation2 + $0x1f8] sm:$0xff]
    %v114 = vld [vmem:[#allocation2 + $0x200] sm:$0xff]
    %v115 = vld [vmem:[#allocation2 + $0x208] sm:$0xff]
    %v116 = vld [vmem:[#allocation2 + $0x210] sm:$0xff]
    %v117 = vld [vmem:[#allocation2 + $0x218] sm:$0xff]
    %v118 = vld [vmem:[#allocation2 + $0x220] sm:$0xff]
    %v119 = vld [vmem:[#allocation2 + $0x228] sm:$0xff]
    %v120 = vld [vmem:[#allocation2 + $0x230] sm:$0xff]
    %v121 = vld [vmem:[#allocation2 + $0x238] sm:$0xff]
    %v122 = vld [vmem:[#allocation2 + $0x240] sm:$0xff]
    %v123 = vld [vmem:[#allocation2 + $0x248] sm:$0xff]
    %v124 = vld [vmem:[#allocation2 + $0x250] sm:$0xff]
    %v125 = vld [vmem:[#allocation2 + $0x258] sm:$0xff]
    %v126 = vld [vmem:[#allocation2 + $0x260] sm:$0xff]
    %v127 = vld [vmem:[#allocation2 + $0x268] sm:$0xff]
    %v128 = vld [vmem:[#allocation2 + $0x270] sm:$0xff]
    %v129 = vld [vmem:[#allocation2 + $0x278] sm:$0xff]
    %v130 = vld [vmem:[#allocation2 + $0x280] sm:$0xff]
    %v131 = vld [vmem:[#allocation2 + $0x288] sm:$0xff]
    %v132 = vld [vmem:[#allocation2 + $0x290] sm:$0xff]
    %v133 = vld [vmem:[#allocation2 + $0x298] sm:$0xff]
    %v134 = vld [vmem:[#allocation2 + $0x2a0] sm:$0xff]
    %v135 = vld [vmem:[#allocation2 + $0x2a8] sm:$0xff]
    %v136 = vld [vmem:[#allocation2 + $0x2b0] sm:$0xff]
    %v137 = vld [vmem:[#allocation2 + $0x2b8] sm:$0xff]
    %v138 = vld [vmem:[#allocation2 + $0x2c0] sm:$0xff]
    %v139 = vld [vmem:[#allocation2 + $0x2c8] sm:$0xff]
    %v140 = vld [vmem:[#allocation2 + $0x2d0] sm:$0xff]
    %v141 = vld [vmem:[#allocation2 + $0x2d8] sm:$0xff]
    %v142 = vld [vmem:[#allocation2 + $0x2e0] sm:$0xff]
    %v143 = vld [vmem:[#allocation2 + $0x2e8] sm:$0xff]
    %v144 = vld [vmem:[#allocation2 + $0x2f0] sm:$0xff]
    %v145 = vld [vmem:[#allocation2 + $0x2f8] sm:$0xff]
    %v146 = vld [vmem:[#allocation2 + $0x300] sm:$0xff]
    %v147 = vld [vmem:[#allocation2 + $0x308] sm:$0xff]
    %v148 = vld [vmem:[%s2] sm:$0x1]
    %v150 = vperm.slane %v148, 0
    %vm152 = vcmask 130048
    %v154 = vsel %vm152, %v49, 0
    %156 = vmatpush.msra.mxu0 %v65
    %157 = vmatpush.msra.mxu0 %v64
    %158 = vmatpush.msra.mxu0 %v63
    %159 = vmatpush.msra.mxu0 %v62
    %160 = vmatpush.msra.mxu0 %v61
    %161 = vmatpush.msra.mxu0 %v60
    %162 = vmatpush.msra.mxu0 %v59
    %163 = vmatpush.msra.mxu0 %v58
    %164 = vmatpush.msra.mxu0 %v57
    %165 = vmatpush.msra.mxu0 %v56
    %166 = vmatpush.msra.mxu0 %v55
    %167 = vmatpush.msra.mxu0 %v54
    %168 = vmatpush.msra.mxu0 %v53
    %169 = vmatpush.msra.mxu0 %v52
    %170 = vmatpush.msra.mxu0 %v51
    %171 = vmatpush.msra.mxu0 %v50
    %172 = vmatmul.f32.gmra.mxu0 %v43
    %v173 = vpop.f32.mrf.mxu0
    %v174 = vadd.f32 %v150, %v173
    %175 = vdwg.mxu0
    %176 = vmatpush.msra.mxu0 %v81
    %177 = vmatpush.msra.mxu0 %v80
    %178 = vmatpush.msra.mxu0 %v79
    %179 = vmatpush.msra.mxu0 %v78
    %180 = vmatpush.msra.mxu0 %v77
    %181 = vmatpush.msra.mxu0 %v76
    %182 = vmatpush.msra.mxu0 %v75
    %183 = vmatpush.msra.mxu0 %v74
    %184 = vmatpush.msra.mxu0 %v73
    %185 = vmatpush.msra.mxu0 %v72
    %186 = vmatpush.msra.mxu0 %v71
    %187 = vmatpush.msra.mxu0 %v70
    %188 = vmatpush.msra.mxu0 %v69
    %189 = vmatpush.msra.mxu0 %v68
    %190 = vmatpush.msra.mxu0 %v67
    %191 = vmatpush.msra.mxu0 %v66
    %192 = vmatmul.f32.gmra.mxu0 %v44
    %v193 = vpop.f32.mrf.mxu0
    %v194 = vadd.f32 %v174, %v193
    %195 = vdwg.mxu0
    %196 = vmatpush.msra.mxu0 %v97
    %197 = vmatpush.msra.mxu0 %v96
    %198 = vmatpush.msra.mxu0 %v95
    %199 = vmatpush.msra.mxu0 %v94
    %200 = vmatpush.msra.mxu0 %v93
    %201 = vmatpush.msra.mxu0 %v92
    %202 = vmatpush.msra.mxu0 %v91
    %203 = vmatpush.msra.mxu0 %v90
    %204 = vmatpush.msra.mxu0 %v89
    %205 = vmatpush.msra.mxu0 %v88
    %206 = vmatpush.msra.mxu0 %v87
    %207 = vmatpush.msra.mxu0 %v86
    %208 = vmatpush.msra.mxu0 %v85
    %209 = vmatpush.msra.mxu0 %v84
    %210 = vmatpush.msra.mxu0 %v83
    %211 = vmatpush.msra.mxu0 %v82
    %212 = vmatmul.f32.gmra.mxu0 %v45
    %v213 = vpop.f32.mrf.mxu0
    %v214 = vadd.f32 %v194, %v213
    %215 = vdwg.mxu0
    %216 = vmatpush.msra.mxu0 %v113
    %217 = vmatpush.msra.mxu0 %v112
    %218 = vmatpush.msra.mxu0 %v111
    %219 = vmatpush.msra.mxu0 %v110
    %220 = vmatpush.msra.mxu0 %v109
    %221 = vmatpush.msra.mxu0 %v108
    %222 = vmatpush.msra.mxu0 %v107
    %223 = vmatpush.msra.mxu0 %v106
    %224 = vmatpush.msra.mxu0 %v105
    %225 = vmatpush.msra.mxu0 %v104
    %226 = vmatpush.msra.mxu0 %v103
    %227 = vmatpush.msra.mxu0 %v102
    %228 = vmatpush.msra.mxu0 %v101
    %229 = vmatpush.msra.mxu0 %v100
    %230 = vmatpush.msra.mxu0 %v99
    %231 = vmatpush.msra.mxu0 %v98
    %232 = vmatmul.f32.gmra.mxu0 %v46
    %v233 = vpop.f32.mrf.mxu0
    %v234 = vadd.f32 %v214, %v233
    %235 = vdwg.mxu0
    %236 = vmatpush.msra.mxu0 %v129
    %237 = vmatpush.msra.mxu0 %v128
    %238 = vmatpush.msra.mxu0 %v127
    %239 = vmatpush.msra.mxu0 %v126
    %240 = vmatpush.msra.mxu0 %v125
    %241 = vmatpush.msra.mxu0 %v124
    %242 = vmatpush.msra.mxu0 %v123
    %243 = vmatpush.msra.mxu0 %v122
    %244 = vmatpush.msra.mxu0 %v121
    %245 = vmatpush.msra.mxu0 %v120
    %246 = vmatpush.msra.mxu0 %v119
    %247 = vmatpush.msra.mxu0 %v118
    %248 = vmatpush.msra.mxu0 %v117
    %249 = vmatpush.msra.mxu0 %v116
    %250 = vmatpush.msra.mxu0 %v115
    %251 = vmatpush.msra.mxu0 %v114
    %252 = vmatmul.f32.gmra.mxu0 %v47
    %v253 = vpop.f32.mrf.mxu0
    %v254 = vadd.f32 %v234, %v253
    %255 = vdwg.mxu0
    %256 = vmatpush.msra.mxu0 %v145
    %257 = vmatpush.msra.mxu0 %v144
    %258 = vmatpush.msra.mxu0 %v143
    %259 = vmatpush.msra.mxu0 %v142
    %260 = vmatpush.msra.mxu0 %v141
    %261 = vmatpush.msra.mxu0 %v140
    %262 = vmatpush.msra.mxu0 %v139
    %263 = vmatpush.msra.mxu0 %v138
    %264 = vmatpush.msra.mxu0 %v137
    %265 = vmatpush.msra.mxu0 %v136
    %266 = vmatpush.msra.mxu0 %v135
    %267 = vmatpush.msra.mxu0 %v134
    %268 = vmatpush.msra.mxu0 %v133
    %269 = vmatpush.msra.mxu0 %v132
    %270 = vmatpush.msra.mxu0 %v131
    %271 = vmatpush.msra.mxu0 %v130
    %272 = vmatmul.f32.gmra.mxu0 %v48
    %v273 = vpop.f32.mrf.mxu0
    %v274 = vadd.f32 %v254, %v273
    %275 = vdwg.mxu0
    %276 = vmatpush.msra.mxu0 0.0
    %277 = vmatpush.msra.mxu0 0.0
    %278 = vmatpush.msra.mxu0 0.0
    %279 = vmatpush.msra.mxu0 0.0
    %280 = vmatpush.msra.mxu0 0.0
    %281 = vmatpush.msra.mxu0 0.0
    %282 = vmatpush.msra.mxu0 0.0
    %283 = vmatpush.msra.mxu0 0.0
    %284 = vmatpush.msra.mxu0 0.0
    %285 = vmatpush.msra.mxu0 0.0
    %286 = vmatpush.msra.mxu0 0.0
    %287 = vmatpush.msra.mxu0 0.0
    %288 = vmatpush.msra.mxu0 0.0
    %289 = vmatpush.msra.mxu0 0.0
    %290 = vmatpush.msra.mxu0 %v147
    %291 = vmatpush.msra.mxu0 %v146
    %292 = vmatmul.f32.gmra.mxu0 %v154
    %v293 = vpop.f32.mrf.mxu0
    %v294 = vadd.f32 %v274, %v293
    %295 = vdwg.mxu0
    %v296 = vmax.f32 %v294, 0.0
    %v297 = vld [vmem:[%s3] sm:$0xff]
    %v298 = vld [vmem:[%s3 + $0x8] sm:$0xff]
    %v299 = vld [vmem:[%s3 + $0x10] sm:$0xff]
    %v300 = vld [vmem:[%s3 + $0x18] sm:$0xff]
    %v301 = vld [vmem:[%s3 + $0x20] sm:$0xff]
    %v302 = vld [vmem:[%s3 + $0x28] sm:$0xff]
    %v303 = vld [vmem:[%s3 + $0x30] sm:$0xff]
    %v304 = vld [vmem:[%s3 + $0x38] sm:$0xff]
    %v305 = vld [vmem:[%s3 + $0x40] sm:$0xff]
    %v306 = vld [vmem:[%s3 + $0x48] sm:$0xff]
    %v307 = vld [vmem:[%s3 + $0x50] sm:$0xff]
    %v308 = vld [vmem:[%s3 + $0x58] sm:$0xff]
    %v309 = vld [vmem:[%s3 + $0x60] sm:$0xff]
    %v310 = vld [vmem:[%s3 + $0x68] sm:$0xff]
    %v311 = vld [vmem:[%s3 + $0x70] sm:$0xff]
    %v312 = vld [vmem:[%s3 + $0x78] sm:$0xff]
    %v313 = vld [vmem:[%s4] sm:$0x1]
    %v315 = vperm.slane %v313, 0
    %317 = vmatpush.msra.mxu0 %v312
    %318 = vmatpush.msra.mxu0 %v311
    %319 = vmatpush.msra.mxu0 %v310
    %320 = vmatpush.msra.mxu0 %v309
    %321 = vmatpush.msra.mxu0 %v308
    %322 = vmatpush.msra.mxu0 %v307
    %323 = vmatpush.msra.mxu0 %v306
    %324 = vmatpush.msra.mxu0 %v305
    %325 = vmatpush.msra.mxu0 %v304
    %326 = vmatpush.msra.mxu0 %v303
    %327 = vmatpush.msra.mxu0 %v302
    %328 = vmatpush.msra.mxu0 %v301
    %329 = vmatpush.msra.mxu0 %v300
    %330 = vmatpush.msra.mxu0 %v299
    %331 = vmatpush.msra.mxu0 %v298
    %332 = vmatpush.msra.mxu0 %v297
    %333 = vmatmul.f32.gmra.mxu0 %v296
    %v334 = vpop.f32.mrf.mxu0
    %v335 = vadd.f32 %v315, %v334
    %336 = vdwg.mxu0
    %v337 = vmax.f32 %v335, 0.0
    %v338 = vld [vmem:[%s5] sm:$0xff]
    %v339 = vld [vmem:[%s5 + $0x8] sm:$0xff]
    %v340 = vld [vmem:[%s5 + $0x10] sm:$0xff]
    %v341 = vld [vmem:[%s5 + $0x18] sm:$0xff]
    %v342 = vld [vmem:[%s5 + $0x20] sm:$0xff]
    %v343 = vld [vmem:[%s5 + $0x28] sm:$0xff]
    %v344 = vld [vmem:[%s5 + $0x30] sm:$0xff]
    %v345 = vld [vmem:[%s5 + $0x38] sm:$0xff]
    %v346 = vld [vmem:[%s6] sm:$0x1]
    %v348 = vperm.slane %v346, 0
    %vm350 = vcmask 523264
    %v352 = vsel %vm350, %v337, 0
    %354 = vmatpush.msra.mxu0 0.0
    %355 = vmatpush.msra.mxu0 0.0
    %356 = vmatpush.msra.mxu0 0.0
    %357 = vmatpush.msra.mxu0 0.0
    %358 = vmatpush.msra.mxu0 0.0
    %359 = vmatpush.msra.mxu0 0.0
    %360 = vmatpush.msra.mxu0 0.0
    %361 = vmatpush.msra.mxu0 0.0
    %362 = vmatpush.msra.mxu0 %v345
    %363 = vmatpush.msra.mxu0 %v344
    %364 = vmatpush.msra.mxu0 %v343
    %365 = vmatpush.msra.mxu0 %v342
    %366 = vmatpush.msra.mxu0 %v341
    %367 = vmatpush.msra.mxu0 %v340
    %368 = vmatpush.msra.mxu0 %v339
    %369 = vmatpush.msra.mxu0 %v338
    %370 = vmatmul.f32.gmra.mxu0 %v352
    %v371 = vpop.f32.mrf.mxu0
    %v372 = vadd.f32 %v348, %v371
    %373 = vdwg.mxu0
    %vm374 = vcmask 80896
    %375 = vst.msk [vmem:[#allocation5] sm:$0xff] %vm374, %v372
    // Predicated region
    $region34: #{tpu_custom_call.1} parent=1 // pred_check
      _
    $region35: #{tpu_custom_call.1} parent=1 // pred_check_branch
      %377 = sbr.rel (0) target = $region37
    $region36: #{tpu_custom_call.1} parent=1 // pred_region
      %379 = vsyncadd [#allocation4], 0
      %s381 = sshll.u32 [#allocation5], 4
      %s382 = int_to_ptr.vmem [resolvable:$true] %s381
      %s383 = sshll.u32 %s7, 4
      %s384 = int_to_ptr.hbm [resolvable:$true] %s383
      %386 = dma.vmem_to_hbm [thread:$0]  %s382, 128, %s384, [#allocation4]
    $region37: #{tpu_custom_call.1} parent=1 // pred_fallthru
      _
    // Predicated region
    $region38: #{tpu_custom_call.1} parent=1 // pred_check
      _
    $region39: #{tpu_custom_call.1} parent=1 // pred_check_branch
      %388 = sbr.rel (0) target = $region41
    $region40: #{tpu_custom_call.1} parent=1 // pred_region
      %390 = dma.done [#allocation4], 128
    $region41: #{tpu_custom_call.1} parent=1 // pred_fallthru
      _
    %391 = vsyncpa [#allocation3], 1
    %392 = vsyncpa [#allocation4], 1

</llo_original>
